<compile_context>
chip_gen: v7x
topology: tpu7x:2x2x1
jax: 0.10.0
libtpu: 0.0.40
codegen_flags: <defaults>
</compile_context>

<pallas_src>
import jax
import jax.numpy as jnp
from jax.experimental import pallas as pl
from jax.experimental.pallas import tpu as pltpu

_TILE_P_MAX = 2048                    # max pixels (lanes) per grid step
_FEATS_VMEM_BUDGET = 24 * 1024 * 1024 # bytes for the double-buffered feats stream


def _choose_tile_p(hw, depth, itemsize):
    """Largest lane tile (multiple of 128, <= _TILE_P_MAX, VMEM-budgeted) that
    divides hw exactly, so no partial blocks and no feature-map padding."""
    if hw % 128 != 0:
        # Caller pads to a lane multiple; this branch is only a safety net
        # (full-extent single block satisfies the (8,128) rule via "equal dim").
        return hw
    max_by_vmem = max(128, (_FEATS_VMEM_BUDGET // (2 * depth * itemsize)) // 128 * 128)
    cap = min(_TILE_P_MAX, max_by_vmem)
    m = hw // 128
    best = 1
    for d in range(min(m, cap // 128), 0, -1):
        if m % d == 0:
            best = d
            break
    return 128 * best


def _probe_argmax_ce_kernel(feats_ref, wt_ref, bias_ref, labels_ref,
                            preds_ref, loss_ref, cnt_ref):
    p = pl.program_id(1)  # pixel-tile index (reduction axis, last in grid)

    @pl.when(p == 0)
    def _():
        # per-batch per-lane accumulators (revisited output blocks)
        loss_ref[...] = jnp.zeros_like(loss_ref)
        cnt_ref[...] = jnp.zeros_like(cnt_ref)

    feats = feats_ref[...]                          # (D, T), pixels on lanes
    wt = wt_ref[...]                                # (C, D) == conv weight^T
    bias = bias_ref[...].astype(jnp.float32)        # (C, 1)

    # 1x1 conv == per-pixel matmul on the MXU; pixels stay on the lane axis.
    logits = jnp.dot(wt, feats, preferred_element_type=jnp.float32) + bias  # (C, T)
    num_classes = logits.shape[0]

    # argmax over the (small) class / sublane axis, first-max-index tie-break
    # (matches torch / jnp argmax).
    mx = jnp.max(logits, axis=0, keepdims=True)                        # (1, T)
    cls_idx = jax.lax.broadcasted_iota(jnp.int32, logits.shape, 0)     # (C, T)
    preds_ref[...] = jnp.min(
        jnp.where(logits == mx, cls_idx, num_classes),
        axis=0, keepdims=True).astype(jnp.int32)                       # (1, T) lane-dense

    # Masked cross-entropy: row_loss = logsumexp(logits) - logits[label].
    labels = labels_ref[...]                                           # (1, T) int32
    valid = jnp.logical_and(labels >= 0, labels < num_classes)         # (1, T)
    onehot = (cls_idx == jnp.where(valid, labels, 0)).astype(jnp.float32)  # (C, T)
    lse = jnp.log(jnp.sum(jnp.exp(logits - mx), axis=0, keepdims=True)) + mx
    tgt = jnp.sum(logits * onehot, axis=0, keepdims=True)
    # Per-lane accumulation only (VPU adds); scalar reduce deferred to wrapper.
    loss_ref[...] += jnp.where(valid, lse - tgt, 0.0)
    cnt_ref[...] += valid.astype(jnp.float32)


@jax.jit
def _probe_ce_pallas(feats, w_t, b_col, labels):
    """feats: (B, D, HW) with HW % 128 == 0; w_t: (C, D); b_col: (C, 1);
    labels: (B, 1, HW) int32 (invalid / padded labels are negative)."""
    B, D, HW = feats.shape
    C = w_t.shape[0]
    tile_p = _choose_tile_p(HW, D, feats.dtype.itemsize)
    n_tiles = HW // tile_p

    # Explicit VMEM limit: double-buffered feats stream dominates; keep above
    # the default scoped limits (16 MiB v5e / 32 MiB v6e,v7x) but well under
    # v7x's 64 MiB physical VMEM.
    feats_stream = 2 * tile_p * D * feats.dtype.itemsize
    vmem_limit = int(min(56 * 2**20, max(32 * 2**20, 2 * feats_stream + (4 << 20))))

    preds, loss_part, cnt_part = pl.pallas_call(
        _probe_argmax_ce_kernel,
        out_shape=(
            jax.ShapeDtypeStruct((B, 1, HW), jnp.int32),       # preds
            jax.ShapeDtypeStruct((B, 1, tile_p), jnp.float32),  # per-lane loss partials
            jax.ShapeDtypeStruct((B, 1, tile_p), jnp.float32),  # per-lane valid counts
        ),
        grid_spec=pltpu.PrefetchScalarGridSpec(
            num_scalar_prefetch=0,
            grid=(B, n_tiles),
            in_specs=[
                pl.BlockSpec((None, D, tile_p), lambda b, p: (b, 0, p)),  # feats
                pl.BlockSpec((C, D), lambda b, p: (0, 0)),                # W^T (resident)
                pl.BlockSpec((C, 1), lambda b, p: (0, 0)),                # bias (resident)
                pl.BlockSpec((None, 1, tile_p), lambda b, p: (b, 0, p)),  # labels
            ],
            out_specs=[
                pl.BlockSpec((None, 1, tile_p), lambda b, p: (b, 0, p)),  # preds
                pl.BlockSpec((None, 1, tile_p), lambda b, p: (b, 0, 0)),  # loss acc
                pl.BlockSpec((None, 1, tile_p), lambda b, p: (b, 0, 0)),  # count acc
            ],
        ),
        compiler_params=pltpu.CompilerParams(
            dimension_semantics=("parallel", "arbitrary"),  # batch parallel (v7x megacore)
            vmem_limit_bytes=vmem_limit,
        ),
    )(feats, w_t, b_col, labels)
    return preds, loss_part, cnt_part


def linear_probe_forward(out, label, weight, bias, num_classes):
    """Mirrors LinearProbe.forward(out, img, label, is_crf=False).

    out:    (B, D, H, W) feature map (`code`)
    label:  (B, Hl, Wl) int labels; values outside [0, num_classes) are ignored
    weight: (D, C) == conv.weight[:, :, 0, 0].T ;  bias: (1, C) or (C,)
    """
    B, D, H, W = out.shape
    Hl, Wl = int(label.shape[-2]), int(label.shape[-1])
    C = num_classes

    if (H, W) != (Hl, Wl):
        # F.interpolate(out, label_shape) then 1x1 conv, commuted: the probe is
        # pointwise-linear and bilinear resize is linear with weights summing
        # to 1, so interp(conv(x) + b) == conv(interp(x)) + b.  Probing at
        # backbone resolution and resizing only C channels moves ~D/C x fewer
        # bytes.  The fused argmax+CE kernel then runs with an identity probe.
        logits_low = (jnp.einsum('bdhw,dc->bchw', out, weight)
                      + jnp.reshape(bias, (1, C, 1, 1)))
        logits_hi = jax.image.resize(logits_low, (B, C, Hl, Wl), method="bilinear")
        feats = logits_hi.reshape(B, C, Hl * Wl).astype(jnp.float32)
        w_t = jnp.eye(C, dtype=feats.dtype)           # probe already applied
        b_col = jnp.zeros((C, 1), jnp.float32)
    else:
        # NCHW stays NCHW: flattening H*W is a free reshape; the kernel keeps
        # pixels on lanes, so no transpose and no HBM copy of the feature map.
        # (bf16 `code` is supported end-to-end: weight is cast to feats dtype.)
        feats = out.reshape(B, D, H * W)
        w_t = jnp.transpose(weight).astype(feats.dtype)   # (C, D), tiny
        b_col = jnp.reshape(bias, (C, 1)).astype(jnp.float32)

    labels3 = label.reshape(B, 1, Hl * Wl).astype(jnp.int32)

    hw = feats.shape[-1]
    if hw % 128 != 0:
        # Rare: lane-align the pixel axis.  Padded labels are -1 -> masked out.
        hw_pad = ((hw + 127) // 128) * 128
        feats = jnp.pad(feats, ((0, 0), (0, 0), (0, hw_pad - hw)))
        labels3 = jnp.pad(labels3, ((0, 0), (0, 0), (0, hw_pad - hw)),
                          constant_values=-1)

    preds3, loss_part, cnt_part = _probe_ce_pallas(feats, w_t, b_col, labels3)

    linear_preds = preds3[:, 0, :Hl * Wl].reshape(B, Hl, Wl)
    # CrossEntropyLoss(reduction='mean') over valid pixels, then .mean() (no-op).
    # NOTE: if no pixel is valid this is 0/0 == NaN, matching the reference.
    linear_loss = jnp.sum(loss_part) / jnp.sum(cnt_part)
    return linear_loss, linear_preds


def supervised_wrapper_forward(code, img, label, weight, bias, num_classes,
                               is_crf=False):
    """Mirrors SupervisedWrapper.forward (non-CRF path); `code` stands in for
    self.model(img, img_pos)[1]."""
    assert not is_crf  # TODO(synk): CRF branch not implemented (batched_crf undefined)
    linear_loss, linear_preds = linear_probe_forward(
        code, label, weight, bias, num_classes)
    output = {"ce-loss": linear_loss}
    total_loss = linear_loss
    return total_loss, output, linear_preds


def _reference(code, label, weight, bias, num_classes):
    """Pure-JAX reference (same-resolution probe) for verification."""
    B, D, H, W = code.shape
    feats = jnp.transpose(code, (0, 2, 3, 1)).reshape(-1, D)
    logits = feats @ weight + jnp.reshape(bias, (1, num_classes))   # (N, C)
    preds = jnp.argmax(logits, axis=-1).reshape(B, H, W)
    lbl = label.reshape(-1)
    mask = jnp.logical_and(lbl >= 0, lbl < num_classes)
    lse = jax.scipy.special.logsumexp(logits, axis=-1)
    tgt = jnp.take_along_axis(
        logits, jnp.where(mask, lbl, 0)[:, None], axis=-1)[:, 0]
    loss = jnp.sum(jnp.where(mask, lse - tgt, 0.0)) / jnp.sum(mask)
    return loss, preds


if __name__ == "__main__":
    key = jax.random.PRNGKey(0)
    k_code, k_w, k_b, k_lbl, k_img = jax.random.split(key, 5)

    B, embed_dim, H, W = 2, 32, 16, 16      # code: (B, D, H, W), label: (B, H, W)
    num_classes = 8

    code = jax.random.normal(k_code, (B, embed_dim, H, W), dtype=jnp.float32)
    img = jax.random.normal(k_img, (B, 3, H, W), dtype=jnp.float32)  # unused (non-CRF)
    # labels in [-1, num_classes): -1 exercises the ignore mask
    label = jax.random.randint(k_lbl, (B, H, W), -1, num_classes, dtype=jnp.int32)

    # 1x1 conv parameters: weight (D, C) == conv.weight[:, :, 0, 0].T
    weight = 0.05 * jax.random.normal(k_w, (embed_dim, num_classes), jnp.float32)
    bias = 0.01 * jax.random.normal(k_b, (1, num_classes), jnp.float32)

    # --- same-resolution path (exactly the reference computation) ---
    total_loss, output, linear_preds = supervised_wrapper_forward(
        code, img, label, weight, bias, num_classes, is_crf=False)
    jax.block_until_ready((total_loss, linear_preds))

    ref_loss, ref_preds = _reference(code, label, weight, bias, num_classes)
    assert linear_preds.shape == (B, H, W)
    assert jnp.allclose(total_loss, ref_loss, rtol=1e-5, atol=1e-5), (
        total_loss, ref_loss)
    assert bool(jnp.all(linear_preds == ref_preds))
    assert jnp.allclose(output["ce-loss"], total_loss)

    # --- resize path (probe commuted with the bilinear upsample) ---
    Hl = Wl = 32
    label_big = jax.random.randint(jax.random.PRNGKey(1), (B, Hl, Wl), -1,
                                   num_classes, dtype=jnp.int32)
    loss_big, preds_big = linear_probe_forward(code, label_big, weight, bias,
                                               num_classes)
    jax.block_until_ready((loss_big, preds_big))
    code_up = jax.image.resize(code, (B, embed_dim, Hl, Wl), method="bilinear")
    ref_loss_big, _ = _reference(code_up, label_big, weight, bias, num_classes)
    assert preds_big.shape == (B, Hl, Wl)
    # commuted order differs only by float rounding; preds may flip on exact
    # near-ties so only the loss is checked here.
    assert jnp.allclose(loss_big, ref_loss_big, rtol=1e-3, atol=1e-3), (
        loss_big, ref_loss_big)

    print("KERNEL_OK")
</pallas_src>

<mosaic_0001>
module attributes {stable_mosaic.version = 11 : i64} {
  func.func @_probe_argmax_ce_kernel(%arg0: i32, %arg1: i32, %arg2: memref<1x32x256xf32, #tpu.memory_space<vmem>>, %arg3: memref<8x32xf32, #tpu.memory_space<vmem>>, %arg4: memref<8x1xf32, #tpu.memory_space<vmem>>, %arg5: memref<1x1x256xi32, #tpu.memory_space<vmem>>, %arg6: memref<1x1x256xi32, #tpu.memory_space<vmem>>, %arg7: memref<1x1x256xf32, #tpu.memory_space<vmem>>, %arg8: memref<1x1x256xf32, #tpu.memory_space<vmem>>) attributes {dimension_semantics = [#tpu.dimension_semantics<parallel>, #tpu.dimension_semantics<arbitrary>], iteration_bounds = array<i64: 2, 1>, scalar_prefetch = 0 : i64, scratch_operands = 0 : i64, tpu.core_type = #tpu.core_type<tc>, window_params = [{transform_indices = @transform_0, window_bounds = array<i64: 1, 32, 256>}, {pipeline_mode = #tpu.pipeline_mode<synchronous>, transform_indices = @transform_1, window_bounds = array<i64: 8, 32>}, {pipeline_mode = #tpu.pipeline_mode<synchronous>, transform_indices = @transform_2, window_bounds = array<i64: 8, 1>}, {transform_indices = @transform_3, window_bounds = array<i64: 1, 1, 256>}, {transform_indices = @transform_4, window_bounds = array<i64: 1, 1, 256>}, {transform_indices = @transform_5, window_bounds = array<i64: 1, 1, 256>}, {transform_indices = @transform_6, window_bounds = array<i64: 1, 1, 256>}]} {
    %c0_i32 = arith.constant 0 : i32
    %0 = arith.cmpi eq, %arg1, %c0_i32 : i32
    %1 = arith.extui %0 : i1 to i32
    %c0_i32_0 = arith.constant 0 : i32
    %2 = arith.cmpi ne, %1, %c0_i32_0 : i32
    scf.if %2 {
      %cst_33 = arith.constant 0.000000e+00 : f32
      %62 = vector.broadcast %cst_33 : f32 to vector<1x256xf32>
      %c0_34 = arith.constant 0 : index
      %c0_35 = arith.constant 0 : index
      %c0_36 = arith.constant 0 : index
      %63 = vector.load %arg7[%c0_34, %c0_35, %c0_36] : memref<1x1x256xf32, #tpu.memory_space<vmem>>, vector<1x1x256xf32>
      %64 = vector.shape_cast %63 : vector<1x1x256xf32> to vector<1x256xf32>
      %65 = vector.shape_cast %62 : vector<1x256xf32> to vector<1x1x256xf32>
      tpu.vector_store %arg7[%c0_34, %c0_35, %c0_36], %65 {strides = array<i32>} : memref<1x1x256xf32, #tpu.memory_space<vmem>>, vector<1x1x256xf32>,
      %cst_37 = arith.constant 0.000000e+00 : f32
      %66 = vector.broadcast %cst_37 : f32 to vector<1x256xf32>
      %c0_38 = arith.constant 0 : index
      %c0_39 = arith.constant 0 : index
      %c0_40 = arith.constant 0 : index
      %67 = vector.load %arg8[%c0_38, %c0_39, %c0_40] : memref<1x1x256xf32, #tpu.memory_space<vmem>>, vector<1x1x256xf32>
      %68 = vector.shape_cast %67 : vector<1x1x256xf32> to vector<1x256xf32>
      %69 = vector.shape_cast %66 : vector<1x256xf32> to vector<1x1x256xf32>
      tpu.vector_store %arg8[%c0_38, %c0_39, %c0_40], %69 {strides = array<i32>} : memref<1x1x256xf32, #tpu.memory_space<vmem>>, vector<1x1x256xf32>,
    } else {
    }
    %c0 = arith.constant 0 : index
    %c0_1 = arith.constant 0 : index
    %c0_2 = arith.constant 0 : index
    %3 = vector.load %arg2[%c0, %c0_1, %c0_2] : memref<1x32x256xf32, #tpu.memory_space<vmem>>, vector<1x32x256xf32>
    %4 = vector.shape_cast %3 : vector<1x32x256xf32> to vector<32x256xf32>
    %c0_3 = arith.constant 0 : index
    %c0_4 = arith.constant 0 : index
    %5 = vector.load %arg3[%c0_3, %c0_4] : memref<8x32xf32, #tpu.memory_space<vmem>>, vector<8x32xf32>
    %c0_5 = arith.constant 0 : index
    %c0_6 = arith.constant 0 : index
    %6 = vector.load %arg4[%c0_5, %c0_6] : memref<8x1xf32, #tpu.memory_space<vmem>>, vector<8x1xf32>
    %cst = arith.constant dense<0.000000e+00> : vector<8x256xf32>
    %7 = tpu.matmul %5, %4, %cst {dimension_numbers = #tpu.dot_dimension_numbers<[1], [0], [0], [1], [0, 0, 1, 1], [], []>} : vector<8x32xf32>, vector<32x256xf32>, vector<8x256xf32> -> vector<8x256xf32>
    %8 = vector.broadcast %6 : vector<8x1xf32> to vector<8x256xf32>
    %9 = arith.addf %7, %8 : vector<8x256xf32>
    %cst_7 = arith.constant dense<0xFF800000> : vector<256xf32>
    %10 = vector.multi_reduction <maximumf>, %9, %cst_7 [0] : vector<8x256xf32> to vector<256xf32>
    %11 = vector.shape_cast %10 : vector<256xf32> to vector<1x256xf32>
    %12 = tpu.iota {dimensions = array<i32: 0>} : vector<8x256xi32>
    %13 = vector.broadcast %11 : vector<1x256xf32> to vector<8x256xf32>
    %14 = arith.cmpf oeq, %9, %13 : vector<8x256xf32>
    %c8_i32 = arith.constant 8 : i32
    %15 = vector.broadcast %c8_i32 : i32 to vector<8x256xi32>
    %16 = arith.select %14, %12, %15 : vector<8x256xi1>, vector<8x256xi32>
    %cst_8 = arith.constant dense<2147483647> : vector<256xi32>
    %17 = vector.multi_reduction <minsi>, %16, %cst_8 [0] : vector<8x256xi32> to vector<256xi32>
    %18 = vector.shape_cast %17 : vector<256xi32> to vector<1x256xi32>
    %c0_9 = arith.constant 0 : index
    %c0_10 = arith.constant 0 : index
    %c0_11 = arith.constant 0 : index
    %19 = vector.load %arg6[%c0_9, %c0_10, %c0_11] : memref<1x1x256xi32, #tpu.memory_space<vmem>>, vector<1x1x256xi32>
    %20 = vector.shape_cast %19 : vector<1x1x256xi32> to vector<1x256xi32>
    %21 = vector.shape_cast %18 : vector<1x256xi32> to vector<1x1x256xi32>
    tpu.vector_store %arg6[%c0_9, %c0_10, %c0_11], %21 {strides = array<i32>} : memref<1x1x256xi32, #tpu.memory_space<vmem>>, vector<1x1x256xi32>,
    %c0_12 = arith.constant 0 : index
    %c0_13 = arith.constant 0 : index
    %c0_14 = arith.constant 0 : index
    %22 = vector.load %arg5[%c0_12, %c0_13, %c0_14] : memref<1x1x256xi32, #tpu.memory_space<vmem>>, vector<1x1x256xi32>
    %23 = vector.shape_cast %22 : vector<1x1x256xi32> to vector<1x256xi32>
    %c0_i32_15 = arith.constant 0 : i32
    %24 = vector.broadcast %c0_i32_15 : i32 to vector<1x256xi32>
    %25 = arith.cmpi sge, %23, %24 : vector<1x256xi32>
    %c8_i32_16 = arith.constant 8 : i32
    %26 = vector.broadcast %c8_i32_16 : i32 to vector<1x256xi32>
    %27 = arith.cmpi slt, %23, %26 : vector<1x256xi32>
    %28 = arith.andi %25, %27 : vector<1x256xi1>
    %c0_i32_17 = arith.constant 0 : i32
    %29 = vector.broadcast %c0_i32_17 : i32 to vector<1x256xi32>
    %30 = arith.select %28, %23, %29 : vector<1x256xi1>, vector<1x256xi32>
    %31 = vector.broadcast %30 : vector<1x256xi32> to vector<8x256xi32>
    %32 = arith.cmpi eq, %12, %31 : vector<8x256xi32>
    %33 = arith.extui %32 : vector<8x256xi1> to vector<8x256xi32>
    %34 = arith.sitofp %33 : vector<8x256xi32> to vector<8x256xf32>
    %35 = vector.broadcast %11 : vector<1x256xf32> to vector<8x256xf32>
    %36 = arith.subf %9, %35 : vector<8x256xf32>
    %37 = math.exp %36 : vector<8x256xf32>
    %cst_18 = arith.constant dense<0.000000e+00> : vector<256xf32>
    %38 = vector.multi_reduction <add>, %37, %cst_18 [0] : vector<8x256xf32> to vector<256xf32>
    %39 = vector.shape_cast %38 : vector<256xf32> to vector<1x256xf32>
    %40 = math.log %39 : vector<1x256xf32>
    %41 = arith.addf %40, %11 : vector<1x256xf32>
    %42 = arith.mulf %9, %34 : vector<8x256xf32>
    %cst_19 = arith.constant dense<0.000000e+00> : vector<256xf32>
    %43 = vector.multi_reduction <add>, %42, %cst_19 [0] : vector<8x256xf32> to vector<256xf32>
    %44 = vector.shape_cast %43 : vector<256xf32> to vector<1x256xf32>
    %c0_20 = arith.constant 0 : index
    %c0_21 = arith.constant 0 : index
    %c0_22 = arith.constant 0 : index
    %45 = vector.load %arg7[%c0_20, %c0_21, %c0_22] : memref<1x1x256xf32, #tpu.memory_space<vmem>>, vector<1x1x256xf32>
    %46 = vector.shape_cast %45 : vector<1x1x256xf32> to vector<1x256xf32>
    %47 = arith.subf %41, %44 : vector<1x256xf32>
    %cst_23 = arith.constant 0.000000e+00 : f32
    %48 = vector.broadcast %cst_23 : f32 to vector<1x256xf32>
    %49 = arith.select %28, %47, %48 : vector<1x256xi1>, vector<1x256xf32>
    %50 = arith.addf %46, %49 : vector<1x256xf32>
    %c0_24 = arith.constant 0 : index
    %c0_25 = arith.constant 0 : index
    %c0_26 = arith.constant 0 : index
    %51 = vector.load %arg7[%c0_24, %c0_25, %c0_26] : memref<1x1x256xf32, #tpu.memory_space<vmem>>, vector<1x1x256xf32>
    %52 = vector.shape_cast %51 : vector<1x1x256xf32> to vector<1x256xf32>
    %53 = vector.shape_cast %50 : vector<1x256xf32> to vector<1x1x256xf32>
    tpu.vector_store %arg7[%c0_24, %c0_25, %c0_26], %53 {strides = array<i32>} : memref<1x1x256xf32, #tpu.memory_space<vmem>>, vector<1x1x256xf32>,
    %c0_27 = arith.constant 0 : index
    %c0_28 = arith.constant 0 : index
    %c0_29 = arith.constant 0 : index
    %54 = vector.load %arg8[%c0_27, %c0_28, %c0_29] : memref<1x1x256xf32, #tpu.memory_space<vmem>>, vector<1x1x256xf32>
    %55 = vector.shape_cast %54 : vector<1x1x256xf32> to vector<1x256xf32>
    %56 = arith.extui %28 : vector<1x256xi1> to vector<1x256xi32>
    %57 = arith.sitofp %56 : vector<1x256xi32> to vector<1x256xf32>
    %58 = arith.addf %55, %57 : vector<1x256xf32>
    %c0_30 = arith.constant 0 : index
    %c0_31 = arith.constant 0 : index
    %c0_32 = arith.constant 0 : index
    %59 = vector.load %arg8[%c0_30, %c0_31, %c0_32] : memref<1x1x256xf32, #tpu.memory_space<vmem>>, vector<1x1x256xf32>
    %60 = vector.shape_cast %59 : vector<1x1x256xf32> to vector<1x256xf32>
    %61 = vector.shape_cast %58 : vector<1x256xf32> to vector<1x1x256xf32>
    tpu.vector_store %arg8[%c0_30, %c0_31, %c0_32], %61 {strides = array<i32>} : memref<1x1x256xf32, #tpu.memory_space<vmem>>, vector<1x1x256xf32>,
    return
  }
  func.func @transform_0(%arg0: i32, %arg1: i32) -> (i32, i32, i32) {
    %c0_i32 = arith.constant 0 : i32
    %c0_i32_0 = arith.constant 0 : i32
    return %arg0, %c0_i32, %arg1 : i32, i32, i32
  }
  func.func @transform_1(%arg0: i32, %arg1: i32) -> (i32, i32) {
    %c0_i32 = arith.constant 0 : i32
    %c0_i32_0 = arith.constant 0 : i32
    %c0_i32_1 = arith.constant 0 : i32
    return %c0_i32, %c0_i32_0 : i32, i32
  }
  func.func @transform_2(%arg0: i32, %arg1: i32) -> (i32, i32) {
    %c0_i32 = arith.constant 0 : i32
    %c0_i32_0 = arith.constant 0 : i32
    %c0_i32_1 = arith.constant 0 : i32
    return %c0_i32, %c0_i32_0 : i32, i32
  }
  func.func @transform_3(%arg0: i32, %arg1: i32) -> (i32, i32, i32) {
    %c0_i32 = arith.constant 0 : i32
    %c0_i32_0 = arith.constant 0 : i32
    return %arg0, %c0_i32, %arg1 : i32, i32, i32
  }
  func.func @transform_4(%arg0: i32, %arg1: i32) -> (i32, i32, i32) {
    %c0_i32 = arith.constant 0 : i32
    %c0_i32_0 = arith.constant 0 : i32
    return %arg0, %c0_i32, %arg1 : i32, i32, i32
  }
  func.func @transform_5(%arg0: i32, %arg1: i32) -> (i32, i32, i32) {
    %c0_i32 = arith.constant 0 : i32
    %c0_i32_0 = arith.constant 0 : i32
    %c0_i32_1 = arith.constant 0 : i32
    return %arg0, %c0_i32, %c0_i32_0 : i32, i32, i32
  }
  func.func @transform_6(%arg0: i32, %arg1: i32) -> (i32, i32, i32) {
    %c0_i32 = arith.constant 0 : i32
    %c0_i32_0 = arith.constant 0 : i32
    %c0_i32_1 = arith.constant 0 : i32
    return %arg0, %c0_i32, %c0_i32_0 : i32, i32, i32
  }
}

</mosaic_0001>

<llo_original>
// kernel: _probe_ce_pallas.1
$region0: #{_probe_ce_pallas.1}
  #allocation0 [shape = 'u32[]', space=smem, size = 0x4, offset = 0x4, fixed_abs, tag = 'smem constant byte address 0x4 - core index']
  #allocation1 [shape = 'u32[144,128]{1,0:T(1,128)}', space=vmem, size = 0x12000, scoped, tag = 'internal scratch']
  %s0 = inlined_call_operand.hbm [shape: f32[2,32,256], index: 0, kind: input, shape index: {}]
  %s1 = inlined_call_operand.vmem [shape: f32[8,32], index: 1, kind: input, shape index: {}]
  %s2 = inlined_call_operand.vmem [shape: f32[8,1], index: 2, kind: input, shape index: {}]
  %s3 = inlined_call_operand.vmem [shape: s32[2,1,256], index: 3, kind: input, shape index: {}]
  %s4 = inlined_call_operand.hbm [shape: s32[2,1,256], index: 4, kind: output, shape index: {0}]
  %s5 = inlined_call_operand.hbm [shape: f32[2,1,256], index: 5, kind: output, shape index: {1}]
  %s6 = inlined_call_operand.hbm [shape: f32[2,1,256], index: 6, kind: output, shape index: {2}]
  %7 = xla_tuple %s4, %s5, %s6
  %s8 = sld [smem:[#allocation0]]
  $region73: #{_probe_ce_pallas.1} parent=0
    _
  %s10 = ssub.s32 1, %s8
  %s11 = scalar_select 0, %s10, %s8
  $region1: #{_probe_ce_pallas.1} parent=0
    #allocation2 [shape = 'u8[65536]{0}', space=vmem, size = 0x10000, scoped, tag = 'input window, operand 0']
    #allocation3 [shape = 's32[2]{0}', space=sflag, size = 0x8, scoped, tag = 'scoped memory for _probe_ce_pallas.1']
    #allocation4 [shape = 's32[2]{0}', space=sflag, size = 0x8, scoped, tag = 'scoped memory for _probe_ce_pallas.1']
    #allocation5 [shape = 'u8[2048]{0}', space=vmem, size = 0x800, scoped, tag = 'output window, operand 0']
    #allocation6 [shape = 'u8[2048]{0}', space=vmem, size = 0x800, scoped, tag = 'output window, operand 1']
    #allocation7 [shape = 's32[2]{0}', space=sflag, size = 0x8, scoped, tag = 'scoped memory for _probe_ce_pallas.1']
    #allocation8 [shape = 'u8[2048]{0}', space=vmem, size = 0x800, scoped, tag = 'output window, operand 2']
    %12 = vsyncpa [#allocation3], 0
    %s13 = scalar_lea.sflag [#allocation3], 1
    %14 = vsyncpa %s13, 0
    %15 = vsyncpa [#allocation4], 0
    %s16 = scalar_lea.sflag [#allocation4], 1
    %17 = vsyncpa %s16, 0
    %18 = vsyncpa [#allocation7], 0
    %s19 = scalar_lea.sflag [#allocation7], 1
    %20 = vsyncpa %s19, 0
    loop: start=0, step=1, limit=4
    $region2: #{_probe_ce_pallas.1} parent=1 // loop_pre_header
      _
    $region3: #{_probe_ce_pallas.1} parent=1 // loop_header
      %s22 = sphi 0, %s26
      %p23 = scmp.ge.s32.totalorder %s22, 4
      %s29 = sphi 0, %s41
      %s30 = sphi 0, %s37
      %s31 = sphi 0, %s29
      %s32 = sphi 0, %s30
      %s33 = sphi 0, %s31
      %s34 = sphi 0, %s32
      %s46 = sphi 0, %s48
      %s49 = sphi 0, %s46
      %s50 = sphi 0, %s49
      %s66 = sphi 0, %s50
      %s70 = sphi 0, %s70
      %s72 = sphi 0, %s70
      %s73 = sphi 0, %s72
      %s87 = sphi 0, %s73
      %s91 = sphi 0, %s91
      %s93 = sphi 0, %s91
      %s94 = sphi 0, %s93
      %s108 = sphi 0, %s94
      %s116 = sphi 0, %s118
      %s119 = sphi 0, %s116
      %s120 = sphi 0, %s119
      %s136 = sphi 0, %s120
      %s144 = sphi 0, %s146
      %s147 = sphi 0, %s144
      %s148 = sphi 0, %s147
      %s164 = sphi 0, %s148
      %s170 = sphi 0, %s172
      %s173 = sphi 0, %s170
      %s174 = sphi 0, %s173
      %s190 = sphi 0, %s174
      %s196 = sphi 0, %s198
      %s199 = sphi 0, %s196
      %s200 = sphi 0, %s199
      %s216 = sphi 0, %s200
    $region4: #{_probe_ce_pallas.1} parent=1 // loop_header_branch
      %25 = sbr.rel (%p23) target = $region8
    $region5: #{_probe_ce_pallas.1} parent=1 // loop_body
      %s27 = ssub.s32 %s22, 1
      %s28 = ssub.s32 %s22, 2
      %s35 = sadd.s32 1, %s30
      %p36 = scmp.ge.s32.totalorder %s35, 1
      %s37 = scalar_select %p36, 0, %s35
      %s38 = sadd.s32 1, %s29
      %s39 = scalar_select %p36, %s38, %s29
      %p40 = scmp.ge.s32.totalorder %s39, 2
      %s41 = scalar_select %p40, 0, %s39
      %s42 = ssub.s32 %s29, %s41
      %s43 = ssub.s32 %s30, %s37
      %s44 = sor.u32 %s42, %s43
      %p45 = scmp.eq.s32.totalorder %s44, 0
      %s47 = sadd.s32 %s46, 1
      %s48 = scalar_select %p45, %s46, %s47
      %p51 = pneg %p45
      %p52 = scmp.eq.s32.totalorder %s22, 1
      %p53 = por %p51, %p52
      %p54 = scmp.ne.s32.totalorder %s46, %s49
      %p55 = scmp.eq.s32.totalorder %s22, 0
      %p56 = por %p54, %p55
      %p57 = scmp.ne.s32.totalorder %s46, %s49
      %p58 = scmp.eq.s32.totalorder %s27, 1
      %p59 = por %p57, %p58
      %p60 = scmp.ne.s32.totalorder %s49, %s50
      %p61 = scmp.eq.s32.totalorder %s27, 0
      %p62 = por %p60, %p61
      %p63 = scmp.ne.s32.totalorder %s49, %s50
      %p64 = scmp.eq.s32.totalorder %s28, 1
      %p65 = por %p63, %p64
      %p67 = scmp.ne.s32.totalorder %s50, %s66
      %p68 = scmp.eq.s32.totalorder %s28, 0
      %p69 = por %p67, %p68
      %s71 = sadd.s32 %s70, 1
      %p74 = scmp.eq.s32.totalorder %s22, 1
      %p75 = scmp.ne.s32.totalorder %s70, %s72
      %p76 = scmp.eq.s32.totalorder %s22, 0
      %p77 = por %p75, %p76
      %p78 = scmp.ne.s32.totalorder %s70, %s72
      %p79 = scmp.eq.s32.totalorder %s27, 1
      %p80 = por %p78, %p79
      %p81 = scmp.ne.s32.totalorder %s72, %s73
      %p82 = scmp.eq.s32.totalorder %s27, 0
      %p83 = por %p81, %p82
      %p84 = scmp.ne.s32.totalorder %s72, %s73
      %p85 = scmp.eq.s32.totalorder %s28, 1
      %p86 = por %p84, %p85
      %p88 = scmp.ne.s32.totalorder %s73, %s87
      %p89 = scmp.eq.s32.totalorder %s28, 0
      %p90 = por %p88, %p89
      %s92 = sadd.s32 %s91, 1
      %p95 = scmp.eq.s32.totalorder %s22, 1
      %p96 = scmp.ne.s32.totalorder %s91, %s93
      %p97 = scmp.eq.s32.totalorder %s22, 0
      %p98 = por %p96, %p97
      %p99 = scmp.ne.s32.totalorder %s91, %s93
      %p100 = scmp.eq.s32.totalorder %s27, 1
      %p101 = por %p99, %p100
      %p102 = scmp.ne.s32.totalorder %s93, %s94
      %p103 = scmp.eq.s32.totalorder %s27, 0
      %p104 = por %p102, %p103
      %p105 = scmp.ne.s32.totalorder %s93, %s94
      %p106 = scmp.eq.s32.totalorder %s28, 1
      %p107 = por %p105, %p106
      %p109 = scmp.ne.s32.totalorder %s94, %s108
      %p110 = scmp.eq.s32.totalorder %s28, 0
      %p111 = por %p109, %p110
      %s112 = ssub.s32 %s29, %s41
      %s113 = ssub.s32 %s30, %s37
      %s114 = sor.u32 %s112, %s113
      %p115 = scmp.eq.s32.totalorder %s114, 0
      %s117 = sadd.s32 %s116, 1
      %s118 = scalar_select %p115, %s116, %s117
      %p121 = pneg %p115
      %p122 = scmp.eq.s32.totalorder %s22, 1
      %p123 = por %p121, %p122
      %p124 = scmp.ne.s32.totalorder %s116, %s119
      %p125 = scmp.eq.s32.totalorder %s22, 0
      %p126 = por %p124, %p125
      %p127 = scmp.ne.s32.totalorder %s116, %s119
      %p128 = scmp.eq.s32.totalorder %s27, 1
      %p129 = por %p127, %p128
      %p130 = scmp.ne.s32.totalorder %s119, %s120
      %p131 = scmp.eq.s32.totalorder %s27, 0
      %p132 = por %p130, %p131
      %p133 = scmp.ne.s32.totalorder %s119, %s120
      %p134 = scmp.eq.s32.totalorder %s28, 1
      %p135 = por %p133, %p134
      %p137 = scmp.ne.s32.totalorder %s120, %s136
      %p138 = scmp.eq.s32.totalorder %s28, 0
      %p139 = por %p137, %p138
      %s140 = ssub.s32 %s29, %s41
      %s141 = ssub.s32 %s30, %s37
      %s142 = sor.u32 %s140, %s141
      %p143 = scmp.eq.s32.totalorder %s142, 0
      %s145 = sadd.s32 %s144, 1
      %s146 = scalar_select %p143, %s144, %s145
      %p149 = pneg %p143
      %p150 = scmp.eq.s32.totalorder %s22, 1
      %p151 = por %p149, %p150
      %p152 = scmp.ne.s32.totalorder %s144, %s147
      %p153 = scmp.eq.s32.totalorder %s22, 0
      %p154 = por %p152, %p153
      %p155 = scmp.ne.s32.totalorder %s144, %s147
      %p156 = scmp.eq.s32.totalorder %s27, 1
      %p157 = por %p155, %p156
      %p158 = scmp.ne.s32.totalorder %s147, %s148
      %p159 = scmp.eq.s32.totalorder %s27, 0
      %p160 = por %p158, %p159
      %p161 = scmp.ne.s32.totalorder %s147, %s148
      %p162 = scmp.eq.s32.totalorder %s28, 1
      %p163 = por %p161, %p162
      %p165 = scmp.ne.s32.totalorder %s148, %s164
      %p166 = scmp.eq.s32.totalorder %s28, 0
      %p167 = por %p165, %p166
      %s168 = ssub.s32 %s29, %s41
      %p169 = scmp.eq.s32.totalorder %s168, 0
      %s171 = sadd.s32 %s170, 1
      %s172 = scalar_select %p169, %s170, %s171
      %p175 = pneg %p169
      %p176 = scmp.eq.s32.totalorder %s22, 1
      %p177 = por %p175, %p176
      %p178 = scmp.ne.s32.totalorder %s170, %s173
      %p179 = scmp.eq.s32.totalorder %s22, 0
      %p180 = por %p178, %p179
      %p181 = scmp.ne.s32.totalorder %s170, %s173
      %p182 = scmp.eq.s32.totalorder %s27, 1
      %p183 = por %p181, %p182
      %p184 = scmp.ne.s32.totalorder %s173, %s174
      %p185 = scmp.eq.s32.totalorder %s27, 0
      %p186 = por %p184, %p185
      %p187 = scmp.ne.s32.totalorder %s173, %s174
      %p188 = scmp.eq.s32.totalorder %s28, 1
      %p189 = por %p187, %p188
      %p191 = scmp.ne.s32.totalorder %s174, %s190
      %p192 = scmp.eq.s32.totalorder %s28, 0
      %p193 = por %p191, %p192
      %s194 = ssub.s32 %s29, %s41
      %p195 = scmp.eq.s32.totalorder %s194, 0
      %s197 = sadd.s32 %s196, 1
      %s198 = scalar_select %p195, %s196, %s197
      %p201 = pneg %p195
      %p202 = scmp.eq.s32.totalorder %s22, 1
      %p203 = por %p201, %p202
      %p204 = scmp.ne.s32.totalorder %s196, %s199
      %p205 = scmp.eq.s32.totalorder %s22, 0
      %p206 = por %p204, %p205
      %p207 = scmp.ne.s32.totalorder %s196, %s199
      %p208 = scmp.eq.s32.totalorder %s27, 1
      %p209 = por %p207, %p208
      %p210 = scmp.ne.s32.totalorder %s199, %s200
      %p211 = scmp.eq.s32.totalorder %s27, 0
      %p212 = por %p210, %p211
      %p213 = scmp.ne.s32.totalorder %s199, %s200
      %p214 = scmp.eq.s32.totalorder %s28, 1
      %p215 = por %p213, %p214
      %p217 = scmp.ne.s32.totalorder %s200, %s216
      %p218 = scmp.eq.s32.totalorder %s28, 0
      %p219 = por %p217, %p218
      %p220 = scmp.le.s32.totalorder 1, %s22
      %p221 = scmp.lt.s32.totalorder %s22, 3
      %p222 = pnand %p220, %p221
      %p223 = pneg %p222
      // Predicated region
      $region9: #{_probe_ce_pallas.1} parent=5 // pred_check
        _
      $region10: #{_probe_ce_pallas.1} parent=5 // pred_check_branch
        %225 = sbr.rel (%p222) target = $region12
      $region11: #{_probe_ce_pallas.1} parent=5 // pred_region
        %s226 = ssub.s32 %s22, 1
        // Predicated region
        $region13: #{_probe_ce_pallas.1} parent=11 // pred_check
          %p227 = pneg %p83
        $region14: #{_probe_ce_pallas.1} parent=11 // pred_check_branch
          %229 = sbr.rel (%p227) target = $region16
        $region15: #{_probe_ce_pallas.1} parent=11 // pred_region
          _
        $region16: #{_probe_ce_pallas.1} parent=11 // pred_fallthru
          _
        // Predicated region
        $region17: #{_probe_ce_pallas.1} parent=11 // pred_check
          %p230 = pneg %p104
        $region18: #{_probe_ce_pallas.1} parent=11 // pred_check_branch
          %232 = sbr.rel (%p230) target = $region20
        $region19: #{_probe_ce_pallas.1} parent=11 // pred_region
          _
        $region20: #{_probe_ce_pallas.1} parent=11 // pred_fallthru
          _
      $region12: #{_probe_ce_pallas.1} parent=5 // pred_fallthru
        _
      %p233 = scmp.lt.s32.totalorder %s22, 2
      // Predicated region
      $region21: #{_probe_ce_pallas.1} parent=5 // pred_check
        %p234 = pneg %p233
      $region22: #{_probe_ce_pallas.1} parent=5 // pred_check_branch
        %236 = sbr.rel (%p234) target = $region24
      $region23: #{_probe_ce_pallas.1} parent=5 // pred_region
        // Predicated region
        $region25: #{_probe_ce_pallas.1} parent=23 // pred_check
          %p237 = pneg %p56
        $region26: #{_probe_ce_pallas.1} parent=23 // pred_check_branch
          %239 = sbr.rel (%p237) target = $region28
        $region27: #{_probe_ce_pallas.1} parent=23 // pred_region
          %s240 = sand.u32 %s46, 1
          %s241 = scalar_lea.sflag [#allocation3], %s240
          %s242 = sand.u32 %s46, 1
          %s243 = smul.addr %s242, 64
          %s244 = scalar_lea.vmem [#allocation2], %s243
          %s245 = smul.u32 2, %s30
          %s247 = ssub.s32 1024, 1024
          %248 = vsyncadd %s241, %s247
          %s249 = smul.addr %s29, 8
          %s250 = sadd.s32 %s245, %s249
          %s251 = smul.addr %s250, 128
          %s252 = scalar_lea.hbm %s0, %s251
          %s253 = sshll.u32 %s244, 4
          %s254 = int_to_ptr.vmem [resolvable:$true] %s253
          %259 = dma.hbm_to_vmem [thread:$0]  %s252, 1024, %s254, %s241, 256, 256, 16
        $region28: #{_probe_ce_pallas.1} parent=23 // pred_fallthru
          _
        // Predicated region
        $region29: #{_probe_ce_pallas.1} parent=23 // pred_check
          %p260 = pneg %p126
        $region30: #{_probe_ce_pallas.1} parent=23 // pred_check_branch
          %262 = sbr.rel (%p260) target = $region32
        $region31: #{_probe_ce_pallas.1} parent=23 // pred_region
          %s263 = smul.u32 2, %s30
          %p264 = scmp.lt.s32.totalorder %s29, 1
          %s265 = scalar_select %p264, %s29, 1
          %p266 = scmp.lt.s32.totalorder %s263, 1
          %s267 = scalar_select %p266, %s263, 1
          %s268 = smul.addr %s265, 2
          %s269 = sadd.s32 %s267, %s268
          %s270 = scalar_lea.vmem %s3, %s269
          %s271 = smul.u32 2, %s30
        $region32: #{_probe_ce_pallas.1} parent=23 // pred_fallthru
          _
      $region24: #{_probe_ce_pallas.1} parent=5 // pred_fallthru
        _
      %p272 = scmp.le.s32.totalorder 1, %s22
      %p273 = scmp.lt.s32.totalorder %s22, 3
      %p274 = pnand %p272, %p273
      %p275 = pneg %p274
      // Predicated region
      $region33: #{_probe_ce_pallas.1} parent=5 // pred_check
        _
      $region34: #{_probe_ce_pallas.1} parent=5 // pred_check_branch
        %277 = sbr.rel (%p274) target = $region36
      $region35: #{_probe_ce_pallas.1} parent=5 // pred_region
        %s278 = ssub.s32 %s22, 1
        %s279 = sand.u32 %s49, 1
        %s280 = scalar_lea.sflag [#allocation3], %s279
        %s281 = sand.u32 %s49, 1
        %s282 = smul.addr %s281, 64
        %s283 = scalar_lea.vmem [#allocation2], %s282
        // Predicated region
        $region37: #{_probe_ce_pallas.1} parent=35 // pred_check
          %p284 = pneg %p62
        $region38: #{_probe_ce_pallas.1} parent=35 // pred_check_branch
          %286 = sbr.rel (%p284) target = $region40
        $region39: #{_probe_ce_pallas.1} parent=35 // pred_region
          %287 = dma.done %s280, 1024
        $region40: #{_probe_ce_pallas.1} parent=35 // pred_fallthru
          _
        %s288 = sand.u32 %s49, 1
        %s289 = scalar_lea.sflag [#allocation3], %s288
        %s290 = sand.u32 %s49, 1
        %s291 = smul.addr %s290, 64
        %s292 = scalar_lea.vmem [#allocation2], %s291
        %p293 = pneg %p62
        %p294 = pneg %p59
        %p295 = pneg %p83
        %p296 = pneg %p80
        %p297 = pneg %p104
        %p298 = pneg %p101
        %s299 = smul.u32 2, %s32
        %p300 = scmp.lt.s32.totalorder %s31, 1
        %s301 = scalar_select %p300, %s31, 1
        %p302 = scmp.lt.s32.totalorder %s299, 1
        %s303 = scalar_select %p302, %s299, 1
        %s304 = smul.addr %s301, 2
        %s305 = sadd.s32 %s303, %s304
        %s306 = scalar_lea.vmem %s3, %s305
        %p307 = pneg %p132
        %p308 = pneg %p129
        %p309 = pneg %p160
        %p310 = pneg %p157
        %s311 = sand.u32 %s147, 1
        %s312 = scalar_lea.sflag [#allocation4], %s311
        %s313 = sand.u32 %s147, 1
        %s314 = smul.addr %s313, 2
        %s315 = scalar_lea.vmem [#allocation5], %s314
        %p316 = pneg %p186
        %p317 = pneg %p183
        %s318 = sand.u32 %s27, 1
        %s319 = scalar_lea.sflag [#allocation7], %s318
        %s320 = sand.u32 %s173, 1
        %s321 = smul.addr %s320, 2
        %s322 = scalar_lea.vmem [#allocation6], %s321
        %p323 = pneg %p212
        %p324 = pneg %p209
        %s325 = sand.u32 %s27, 1
        %s326 = scalar_lea.sflag [#allocation7], %s325
        %s327 = sand.u32 %s199, 1
        %s328 = smul.addr %s327, 2
        %s329 = scalar_lea.vmem [#allocation8], %s328
        %s330 = smul.u32 2, %s32
        %s331 = smul.u32 2, %s32
        %p332 = scmp.lt.s32.totalorder %s31, 1
        %s333 = scalar_select %p332, %s31, 1
        %p334 = scmp.lt.s32.totalorder %s331, 1
        %s335 = scalar_select %p334, %s331, 1
        %s336 = smul.addr %s333, 2
        %s337 = sadd.s32 %s335, %s336
        %s338 = scalar_lea.vmem %s3, %s337
        %s339 = smul.u32 2, %s32
        %s340 = smul.u32 2, %s32
        %p341 = scmp.eq.s32.totalorder %s32, 0
        // Predicated region
        $region41: #{_probe_ce_pallas.1} parent=35 // pred_check
          %p342 = pneg %p341
        $region42: #{_probe_ce_pallas.1} parent=35 // pred_check_branch
          %344 = sbr.rel (%p342) target = $region44
        $region43: #{_probe_ce_pallas.1} parent=35 // pred_region
          %v345 = vlaneseq
          %vm346 = vcmp.ge.s32.totalorder %v345, 0
          %vm347 = vcmp.lt.s32.totalorder %v345, 256
          %vm348 = vmand %vm346, %vm347
          %349 = vst.msk [vmem:[%s322] sm:$0x3] %vm348, 0.0
          %350 = vst.msk [vmem:[%s329] sm:$0x3] %vm348, 0.0
        $region44: #{_probe_ce_pallas.1} parent=35 // pred_fallthru
          _
        %v351 = vld [vmem:[%s283] sm:$0xff]
        %v352 = vld [vmem:[%s283 + $0x8] sm:$0xff]
        %v353 = vld [vmem:[%s283 + $0x10] sm:$0xff]
        %v354 = vld [vmem:[%s283 + $0x18] sm:$0xff]
        %v355 = vld [vmem:[%s283 + $0x20] sm:$0xff]
        %v356 = vld [vmem:[%s283 + $0x28] sm:$0xff]
        %v357 = vld [vmem:[%s283 + $0x30] sm:$0xff]
        %v358 = vld [vmem:[%s283 + $0x38] sm:$0xff]
        %v359 = vld [vmem:[%s1] sm:$0xff]
        %v360 = vld [vmem:[%s2] sm:$0xff]
        %362 = vset.pattern.permute.xlu0 0
        %363 = vperm.xlu0 %362, %v360
        %v364 = vpop.permute.xlu0 %363
        %vm366 = vcmask 261120
        %v368 = vsel %vm366, %v359, 0
        %370 = vmatprep.subr.mxu0 %v352
        %371 = vmatpush1.msra.mxu0 %v351
        %372 = vmatprep.subr.mxu0 %v354
        %373 = vmatpush1.msra.mxu0 %v353
        %374 = vmatprep.subr.mxu0 %v356
        %375 = vmatpush1.msra.mxu0 %v355
        %376 = vmatprep.subr.mxu0 %v358
        %377 = vmatpush1.msra.mxu0 %v357
        %378 = vmatprep.subr.mxu0 0.0
        %379 = vmatpush1.msra.mxu0 0.0
        %380 = vmatprep.subr.mxu0 0.0
        %381 = vmatpush1.msra.mxu0 0.0
        %382 = vmatprep.subr.mxu0 0.0
        %383 = vmatpush1.msra.mxu0 0.0
        %384 = vmatprep.subr.mxu0 0.0
        %385 = vmatpush1.msra.mxu0 0.0
        %386 = vmatprep.subr.mxu0 0.0
        %387 = vmatpush1.msra.mxu0 0.0
        %388 = vmatprep.subr.mxu0 0.0
        %389 = vmatpush1.msra.mxu0 0.0
        %390 = vmatprep.subr.mxu0 0.0
        %391 = vmatpush1.msra.mxu0 0.0
        %392 = vmatprep.subr.mxu0 0.0
        %393 = vmatpush1.msra.mxu0 0.0
        %394 = vmatprep.subr.mxu0 0.0
        %395 = vmatpush1.msra.mxu0 0.0
        %396 = vmatprep.subr.mxu0 0.0
        %397 = vmatpush1.msra.mxu0 0.0
        %398 = vmatprep.subr.mxu0 0.0
        %399 = vmatpush1.msra.mxu0 0.0
        %400 = vmatprep.subr.mxu0 0.0
        %401 = vmatpush1.msra.mxu0 0.0
        %402 = vmatprep.subr.mxu0 0.0
        %403 = vmatpush1.msra.mxu0 0.0
        %404 = vmatprep.subr.mxu0 0.0
        %405 = vmatpush1.msra.mxu0 0.0
        %406 = vmatprep.subr.mxu0 0.0
        %407 = vmatpush1.msra.mxu0 0.0
        %408 = vmatprep.subr.mxu0 0.0
        %409 = vmatpush1.msra.mxu0 0.0
        %410 = vmatprep.subr.mxu0 0.0
        %411 = vmatpush1.msra.mxu0 0.0
        %412 = vmatprep.subr.mxu0 0.0
        %413 = vmatpush1.msra.mxu0 0.0
        %414 = vmatprep.subr.mxu0 0.0
        %415 = vmatpush1.msra.mxu0 0.0
        %416 = vmatprep.subr.mxu0 0.0
        %417 = vmatpush1.msra.mxu0 0.0
        %418 = vmatprep.subr.mxu0 0.0
        %419 = vmatpush1.msra.mxu0 0.0
        %420 = vmatprep.subr.mxu0 0.0
        %421 = vmatpush1.msra.mxu0 0.0
        %422 = vmatprep.subr.mxu0 0.0
        %423 = vmatpush1.msra.mxu0 0.0
        %424 = vmatprep.subr.mxu0 0.0
        %425 = vmatpush1.msra.mxu0 0.0
        %426 = vmatprep.subr.mxu0 0.0
        %427 = vmatpush1.msra.mxu0 0.0
        %428 = vmatprep.subr.mxu0 0.0
        %429 = vmatpush1.msra.mxu0 0.0
        %430 = vmatprep.subr.mxu0 0.0
        %431 = vmatpush1.msra.mxu0 0.0
        %432 = vmatprep.subr.mxu0 0.0
        %433 = vmatpush1.msra.mxu0 0.0
        %434 = vmatprep.mubr.f32.mxu0 0.0
        %435 = vmatmul.mubr.f32.gmra.mrb[0].mxu0 %v368
        %v436 = vpop.f32.mrb[0].mxu0
        %v437 = vadd.f32 %v364, %v436
        %v438 = vpop.f32.mrb[0].mxu0
        %v439 = vadd.f32 %v364, %v438
        %440 = vdwg.mxu0
        %v441 = vrot.slane %v437, 4
        %v442 = vmax.f32 %v437, %v441
        %v443 = vrot.slane %v442, 2
        %v444 = vmax.f32 %v442, %v443
        %v445 = vrot.slane %v444, 1
        %v446 = vmax.f32 %v444, %v445
        %v447 = vrot.slane %v439, 4
        %v448 = vmax.f32 %v439, %v447
        %v449 = vrot.slane %v448, 2
        %v450 = vmax.f32 %v448, %v449
        %v451 = vrot.slane %v450, 1
        %v452 = vmax.f32 %v450, %v451
        %v453 = vlaneseq
        %v454 = vshrl.u32 %v453, 7
        %vm455 = vcmp.eq.f32.partialorder %v437, %v446
        %vm456 = vcmp.eq.f32.partialorder %v439, %v452
        %v457 = vsel %vm455, %v454, 8
        %v458 = vsel %vm456, %v454, 8
        %v459 = vrot.slane %v457, 4
        %vm460 = vcmp.lt.s32.totalorder %v457, %v459
        %v461 = vsel %vm460, %v457, %v459
        %v462 = vrot.slane %v461, 2
        %vm463 = vcmp.lt.s32.totalorder %v461, %v462
        %v464 = vsel %vm463, %v461, %v462
        %v465 = vrot.slane %v464, 1
        %vm466 = vcmp.lt.s32.totalorder %v464, %v465
        %v467 = vsel %vm466, %v464, %v465
        %v468 = vrot.slane %v458, 4
        %vm469 = vcmp.lt.s32.totalorder %v458, %v468
        %v470 = vsel %vm469, %v458, %v468
        %v471 = vrot.slane %v470, 2
        %vm472 = vcmp.lt.s32.totalorder %v470, %v471
        %v473 = vsel %vm472, %v470, %v471
        %v474 = vrot.slane %v473, 1
        %vm475 = vcmp.lt.s32.totalorder %v473, %v474
        %v476 = vsel %vm475, %v473, %v474
        %v477 = vcombine.low %v467, %v476
        %v479 = vunpack.c.l.s4 1966171168
        %v480 = vunpack.c.0.s8 %v479
        %v481 = vlaneseq
        %v482 = vshrl.u32 %v481, 7
        %v483 = vsub.s32 %v480, %v482
        %v484 = vrot.slane %v477, %v483
        %v486 = vunpack.c.l.s4 1966171168
        %v487 = vunpack.c.0.s8 %v486
        %v488 = vlaneseq
        %v489 = vshrl.u32 %v488, 7
        %v490 = vsub.s32 %v487, %v489
        %v491 = vrot.slane %v484, %v490
        %v492 = vlaneseq
        %vm493 = vcmp.ge.s32.totalorder %v492, 0
        %vm494 = vcmp.lt.s32.totalorder %v492, 256
        %vm495 = vmand %vm493, %vm494
        %496 = vst.msk [vmem:[%s315] sm:$0x3] %vm495, %v491
        %v497 = vld [vmem:[%s338] sm:$0x3]
        %vm498 = vcmp.ge.s32.totalorder %v497, 0
        %vm499 = vcmp.lt.s32.totalorder %v497, 8
        %vm500 = vmand %vm498, %vm499
        %v501 = vsel %vm500, %v497, 0
        %v502 = vlaneseq
        %v503 = vshrl.u32 %v502, 7
        %v504 = vsub.s32 0, %v503
        %v505 = vrot.slane %v501, %v504
        %v506 = vlaneseq
        %v507 = vshrl.u32 %v506, 7
        %v508 = vsub.s32 1, %v507
        %v509 = vrot.slane %v501, %v508
        %vm510 = vcmp.eq.s32.totalorder %v454, %v505
        %vm511 = vcmp.eq.s32.totalorder %v454, %v509
        %v512 = vsel %vm510, 1, 0
        %v513 = vsel %vm511, 1, 0
        %v514 = vcvt.s32.f32 %v512
        %v515 = vcvt.s32.f32 %v513
        %v516 = vsub.f32 %v437, %v446
        %v517 = vsub.f32 %v439, %v452
        %v518 = vmul.f32 %v516, 1.442695
        %v519 = vpow.pop %v518
        %v520 = vmul.f32 %v517, 1.442695
        %v521 = vpow.pop %v520
        %v522 = vrot.slane %v519, 4
        %v523 = vadd.f32 %v519, %v522
        %v524 = vrot.slane %v523, 2
        %v525 = vadd.f32 %v523, %v524
        %v526 = vrot.slane %v525, 1
        %v527 = vadd.f32 %v525, %v526
        %v528 = vrot.slane %v521, 4
        %v529 = vadd.f32 %v521, %v528
        %v530 = vrot.slane %v529, 2
        %v531 = vadd.f32 %v529, %v530
        %v532 = vrot.slane %v531, 1
        %v533 = vadd.f32 %v531, %v532
        %v534 = vlog2.pop %v527
        %v535 = vmul.f32 %v534, 0.6931472
        %v536 = vlog2.pop %v533
        %v537 = vmul.f32 %v536, 0.6931472
        %v538 = vadd.f32 %v535, %v446
        %v539 = vadd.f32 %v537, %v452
        %v540 = vmul.f32 %v437, %v514
        %v541 = vmul.f32 %v439, %v515
        %v542 = vrot.slane %v540, 4
        %v543 = vadd.f32 %v540, %v542
        %v544 = vrot.slane %v543, 2
        %v545 = vadd.f32 %v543, %v544
        %v546 = vrot.slane %v545, 1
        %v547 = vadd.f32 %v545, %v546
        %v548 = vrot.slane %v541, 4
        %v549 = vadd.f32 %v541, %v548
        %v550 = vrot.slane %v549, 2
        %v551 = vadd.f32 %v549, %v550
        %v552 = vrot.slane %v551, 1
        %v553 = vadd.f32 %v551, %v552
        %v554 = vld [vmem:[%s322] sm:$0x3]
        %v555 = vsub.f32 %v538, %v547
        %v556 = vsub.f32 %v539, %v553
        %v559 = vcombine.low %v555, %v556
        %v561 = vunpack.c.l.s4 1966171168
        %v562 = vunpack.c.0.s8 %v561
        %v563 = vlaneseq
        %v564 = vshrl.u32 %v563, 7
        %v565 = vsub.s32 %v562, %v564
        %v566 = vrot.slane %v559, %v565
        %v568 = vunpack.c.l.s4 1966171168
        %v569 = vunpack.c.0.s8 %v568
        %v570 = vlaneseq
        %v571 = vshrl.u32 %v570, 7
        %v572 = vsub.s32 %v569, %v571
        %v573 = vrot.slane %v566, %v572
        %v575 = vsel %vm500, %v573, 0.0
        %v576 = vadd.f32 %v554, %v575
        %577 = vst.msk [vmem:[%s322] sm:$0x3] %vm495, %v576
        %v578 = vld [vmem:[%s329] sm:$0x3]
        %v579 = vsel %vm500, 1, 0
        %v580 = vcvt.s32.f32 %v579
        %v581 = vadd.f32 %v578, %v580
        %582 = vst.msk [vmem:[%s329] sm:$0x3] %vm495, %v581
        %s583 = sand.u32 %s147, 1
        %s584 = scalar_lea.sflag [#allocation4], %s583
        %s585 = sand.u32 %s147, 1
        %s586 = smul.addr %s585, 2
        %s587 = scalar_lea.vmem [#allocation5], %s586
        %s588 = sand.u32 %s27, 1
        %s589 = scalar_lea.sflag [#allocation7], %s588
        %s590 = sand.u32 %s173, 1
        %s591 = smul.addr %s590, 2
        %s592 = scalar_lea.vmem [#allocation6], %s591
        %s593 = sand.u32 %s27, 1
        %s594 = scalar_lea.sflag [#allocation7], %s593
        %s595 = sand.u32 %s199, 1
        %s596 = smul.addr %s595, 2
        %s597 = scalar_lea.vmem [#allocation8], %s596
        // Predicated region
        $region45: #{_probe_ce_pallas.1} parent=35 // pred_check
          %p598 = pneg %p157
        $region46: #{_probe_ce_pallas.1} parent=35 // pred_check_branch
          %600 = sbr.rel (%p598) target = $region48
        $region47: #{_probe_ce_pallas.1} parent=35 // pred_region
          %s601 = smul.u32 2, %s32
          %s603 = ssub.s32 32, 32
          %604 = vsyncadd %s584, %s603
          %s605 = smul.addr %s31, 2
          %s606 = sadd.s32 %s601, %s605
          %s607 = smul.addr %s606, 16
          %s608 = scalar_lea.hbm %s4, %s607
          %s610 = sshll.u32 %s587, 4
          %s611 = int_to_ptr.vmem [resolvable:$true] %s610
          %613 = dma.vmem_to_hbm [thread:$0]  %s611, 32, %s608, %s584
        $region48: #{_probe_ce_pallas.1} parent=35 // pred_fallthru
          _
        // Predicated region
        $region49: #{_probe_ce_pallas.1} parent=35 // pred_check
          %p614 = pneg %p183
        $region50: #{_probe_ce_pallas.1} parent=35 // pred_check_branch
          %616 = sbr.rel (%p614) target = $region52
        $region51: #{_probe_ce_pallas.1} parent=35 // pred_region
          %s618 = ssub.s32 32, 32
          %619 = vsyncadd %s589, %s618
          %s620 = smul.addr %s31, 2
          %s621 = smul.addr %s620, 16
          %s622 = scalar_lea.hbm %s5, %s621
          %s624 = sshll.u32 %s592, 4
          %s625 = int_to_ptr.vmem [resolvable:$true] %s624
          %627 = dma.vmem_to_hbm [thread:$0]  %s625, 32, %s622, %s589
        $region52: #{_probe_ce_pallas.1} parent=35 // pred_fallthru
          _
        // Predicated region
        $region53: #{_probe_ce_pallas.1} parent=35 // pred_check
          %p628 = pneg %p209
        $region54: #{_probe_ce_pallas.1} parent=35 // pred_check_branch
          %630 = sbr.rel (%p628) target = $region56
        $region55: #{_probe_ce_pallas.1} parent=35 // pred_region
          %s632 = ssub.s32 32, 32
          %633 = vsyncadd %s594, %s632
          %s634 = smul.addr %s31, 2
          %s635 = smul.addr %s634, 16
          %s636 = scalar_lea.hbm %s6, %s635
          %s638 = sshll.u32 %s597, 4
          %s639 = int_to_ptr.vmem [resolvable:$true] %s638
          %641 = dma.vmem_to_hbm [thread:$0]  %s639, 32, %s636, %s594
        $region56: #{_probe_ce_pallas.1} parent=35 // pred_fallthru
          _
      $region36: #{_probe_ce_pallas.1} parent=5 // pred_fallthru
        _
      %p642 = scmp.le.s32.totalorder 2, %s22
      // Predicated region
      $region57: #{_probe_ce_pallas.1} parent=5 // pred_check
        %p643 = pneg %p642
      $region58: #{_probe_ce_pallas.1} parent=5 // pred_check_branch
        %645 = sbr.rel (%p643) target = $region60
      $region59: #{_probe_ce_pallas.1} parent=5 // pred_region
        %s646 = ssub.s32 %s22, 2
        // Predicated region
        $region61: #{_probe_ce_pallas.1} parent=59 // pred_check
          %p647 = pneg %p163
        $region62: #{_probe_ce_pallas.1} parent=59 // pred_check_branch
          %649 = sbr.rel (%p647) target = $region64
        $region63: #{_probe_ce_pallas.1} parent=59 // pred_region
          %s650 = sand.u32 %s148, 1
          %s651 = scalar_lea.sflag [#allocation4], %s650
          %s652 = sand.u32 %s148, 1
          %s653 = smul.addr %s652, 2
          %s654 = scalar_lea.vmem [#allocation5], %s653
          %655 = dma.done %s651, 32
        $region64: #{_probe_ce_pallas.1} parent=59 // pred_fallthru
          _
        // Predicated region
        $region65: #{_probe_ce_pallas.1} parent=59 // pred_check
          %p656 = pneg %p189
        $region66: #{_probe_ce_pallas.1} parent=59 // pred_check_branch
          %658 = sbr.rel (%p656) target = $region68
        $region67: #{_probe_ce_pallas.1} parent=59 // pred_region
          %s659 = sand.u32 %s28, 1
          %s660 = scalar_lea.sflag [#allocation7], %s659
          %s661 = sand.u32 %s174, 1
          %s662 = smul.addr %s661, 2
          %s663 = scalar_lea.vmem [#allocation6], %s662
          %664 = dma.done %s660, 32
        $region68: #{_probe_ce_pallas.1} parent=59 // pred_fallthru
          _
        // Predicated region
        $region69: #{_probe_ce_pallas.1} parent=59 // pred_check
          %p665 = pneg %p215
        $region70: #{_probe_ce_pallas.1} parent=59 // pred_check_branch
          %667 = sbr.rel (%p665) target = $region72
        $region71: #{_probe_ce_pallas.1} parent=59 // pred_region
          %s668 = sand.u32 %s28, 1
          %s669 = scalar_lea.sflag [#allocation7], %s668
          %s670 = sand.u32 %s200, 1
          %s671 = smul.addr %s670, 2
          %s672 = scalar_lea.vmem [#allocation8], %s671
          %673 = dma.done %s669, 32
        $region72: #{_probe_ce_pallas.1} parent=59 // pred_fallthru
          _
      $region60: #{_probe_ce_pallas.1} parent=5 // pred_fallthru
        _
    $region6: #{_probe_ce_pallas.1} parent=1 // loop_footer
      %s26 = sadd.s32 1, %s22
    $region7: #{_probe_ce_pallas.1} parent=1 // loop_footer_branch
      %21 = sbr.rel target = $region3
    $region8: #{_probe_ce_pallas.1} parent=1 // loop_exit
      _
    %674 = vsyncpa [#allocation3], 1
    %s675 = scalar_lea.sflag [#allocation3], 1
    %676 = vsyncpa %s675, 1
    %677 = vsyncpa [#allocation4], 1
    %s678 = scalar_lea.sflag [#allocation4], 1
    %679 = vsyncpa %s678, 1
    %680 = vsyncpa [#allocation7], 1
    %s681 = scalar_lea.sflag [#allocation7], 1
    %682 = vsyncpa %s681, 1

</llo_original>
